<compile_context>
chip_gen: v7x
topology: tpu7x:2x2x1
jax: 0.10.0
libtpu: 0.0.40
codegen_flags: <defaults>
</compile_context>

<pallas_src>
import math
import jax
import jax.numpy as jnp
from jax import lax
from jax.experimental import pallas as pl
from jax.experimental.pallas import tpu as pltpu

B, S, D = 2, 8, 32        # batch, seq, d_model (= `size`)
H = 4                     # attention heads
DK = D // H               # per-head dim
DFF = 64                  # feed-forward hidden dim
N = B * S                 # flattened (batch*seq) rows
EPS = 1e-6
NEG_INF = -1e9

W_COLS = 4 * D + DFF + D  # wqkv(96) | wo(32) | w1(64) | w2(32) = 224


def _layer_norm(x, g, b):
    mean = jnp.mean(x, axis=-1, keepdims=True)
    var = jnp.mean((x - mean) ** 2, axis=-1, keepdims=True)
    return (x - mean) * lax.rsqrt(var + EPS) * g + b


def attending_layer_kernel(x_ref, bias_ref, vec_ref, w_ref, o_ref):
    x = x_ref[...].reshape(N, D)            # fold batch onto sublanes

    # ---- unpack the two parameter slabs (static slices of two loads) ----
    vec = vec_ref[...]                      # (8, 128)
    ln1_g = vec[0:1, :D]
    ln1_b = vec[1:2, :D]
    bqkv = vec[2:3, :3 * D]                 # 1/sqrt(dk) already folded into q part
    bo = vec[3:4, :D]
    ln2_g = vec[4:5, :D]
    ln2_b = vec[5:6, :D]
    b1 = vec[6:7, :DFF]
    b2 = vec[7:8, :D]

    w = w_ref[...]                          # (64, 224)
    wqkv = w[:D, :3 * D]                    # (32, 96), scale folded into q cols
    wo = w[:D, 3 * D:4 * D]                 # (32, 32)
    w1 = w[:D, 4 * D:4 * D + DFF]           # (32, 64)
    w2 = w[:, 4 * D + DFF:W_COLS]           # (64, 32)

    # ---- sublayer 0: x + self_attn(LayerNorm(x), mask)  (dropout = identity) ----
    xn = _layer_norm(x, ln1_g, ln1_b)

    # fused QKV projection: one (N,D)@(D,3D) MXU push
    qkv = jnp.dot(xn, wqkv, preferred_element_type=jnp.float32) + bqkv
    q = qkv[:, :D]
    k = qkv[:, D:2 * D]
    v = qkv[:, 2 * D:3 * D]

    # stack heads along sublanes once -> (H*N, DK); all attention math below is
    # a single MXU push / single VPU pass per step.
    qs = jnp.concatenate([q[:, h * DK:(h + 1) * DK] for h in range(H)], axis=0)
    ks = jnp.concatenate([k[:, h * DK:(h + 1) * DK] for h in range(H)], axis=0)
    vs = jnp.concatenate([v[:, h * DK:(h + 1) * DK] for h in range(H)], axis=0)

    # one (H*N,DK) x (DK,H*N) score matmul; cross-head / cross-batch / padded-key
    # entries are killed by the precomputed additive bias.
    scores = lax.dot_general(qs, ks, (((1,), (1,)), ((), ())),
                             preferred_element_type=jnp.float32) + bias_ref[...]
    scores = scores - jnp.max(scores, axis=-1, keepdims=True)
    p = jnp.exp(scores)                     # masked entries underflow to exactly 0
    # exact reciprocal keeps 1e-4 parity with the f32 reference
    # (approx=True + one Newton step would move this to the EUP slot)
    p = p * pl.reciprocal(jnp.sum(p, axis=-1, keepdims=True))

    # one PV matmul; cross-head prob entries are exactly zero so the stacked
    # contraction is exact.  Per-head slices are re-laid lane-wise in vregs.
    pv = jnp.dot(p, vs, preferred_element_type=jnp.float32)        # (H*N, DK)
    attn = jnp.concatenate([pv[h * N:(h + 1) * N, :] for h in range(H)], axis=1)

    x1 = x + jnp.dot(attn, wo, preferred_element_type=jnp.float32) + bo

    # ---- sublayer 1: x1 + ff(LayerNorm(x1)) ----
    xn2 = _layer_norm(x1, ln2_g, ln2_b)
    hdn = jnp.maximum(
        jnp.dot(xn2, w1, preferred_element_type=jnp.float32) + b1, 0.0)
    ff = jnp.dot(hdn, w2, preferred_element_type=jnp.float32) + b2

    o_ref[...] = (x1 + ff).reshape(B, S, D).astype(o_ref.dtype)


def _pack_params(params):
    """Pack the 12 parameter tensors into two DMA slabs (host-side, tiny)."""
    (ln1_g, ln1_b, wq, bq, wk, bk, wv, bv, wo, bo,
     ln2_g, ln2_b, w1, b1, w2, b2) = params

    scale = 1.0 / math.sqrt(DK)             # fold 1/sqrt(dk) into the q projection
    wqkv = jnp.concatenate([wq * scale, wk, wv], axis=1)     # (D, 3D)
    bqkv = jnp.concatenate([bq * scale, bk, bv], axis=1)     # (1, 3D)

    def row(p):                              # pad each (1, w) param to one 128-lane row
        return jnp.pad(p, ((0, 0), (0, 128 - p.shape[1])))

    vec_slab = jnp.concatenate(
        [row(ln1_g), row(ln1_b), row(bqkv), row(bo),
         row(ln2_g), row(ln2_b), row(b1), row(b2)], axis=0)  # (8, 128)

    top = jnp.concatenate([wqkv, wo, w1], axis=1)            # (D, 4D+DFF) = (32, 192)
    top = jnp.pad(top, ((0, DFF - D), (0, 0)))               # (64, 192)
    w_slab = jnp.concatenate([top, w2], axis=1)              # (64, 224)
    return vec_slab, w_slab


def _build_bias(mask):
    """Additive attention bias over the head/batch-stacked (H*N, H*N) scores.

    0 where (same head, same batch, key not padded), -1e9 elsewhere.
    """
    key_ok = mask.reshape(B, S) > 0
    idx = jnp.arange(H * N)
    head = idx // N
    bat = (idx % N) // S
    pos = (idx % N) % S
    same = (head[:, None] == head[None, :]) & (bat[:, None] == bat[None, :])
    attend = same & key_ok[bat, pos][None, :]
    return jnp.where(attend, 0.0, NEG_INF).astype(jnp.float32)


def attending_layer(x, mask, params):
    """x: (B,S,D) f32; mask: (B,1,S) f32 key-padding mask (1=attend, 0=masked)."""
    vec_slab, w_slab = _pack_params(params)
    bias = _build_bias(mask)

    return pl.pallas_call(
        attending_layer_kernel,
        out_shape=jax.ShapeDtypeStruct((B, S, D), x.dtype),
        grid_spec=pltpu.PrefetchScalarGridSpec(
            num_scalar_prefetch=0,
            grid=(1,),                                     # single grid step
            in_specs=[
                pl.BlockSpec((B, S, D), lambda i: (0, 0, 0)),          # x
                pl.BlockSpec((H * N, H * N), lambda i: (0, 0)),        # additive bias
                pl.BlockSpec((8, 128), lambda i: (0, 0)),              # vector slab
                pl.BlockSpec((DFF, W_COLS), lambda i: (0, 0)),         # weight slab
            ],
            out_specs=pl.BlockSpec((B, S, D), lambda i: (0, 0, 0)),
        ),
        compiler_params=pltpu.CompilerParams(
            dimension_semantics=("arbitrary",)),
    )(x, bias, vec_slab, w_slab)


def init_params(key):
    """Deterministic init: PyTorch-Linear-style uniform(-1/sqrt(fan_in), ...)."""
    ks = jax.random.split(key, 8)

    def lin(k, fan_in, fan_out):
        bound = 1.0 / math.sqrt(fan_in)
        kw, kb = jax.random.split(k)
        w = jax.random.uniform(kw, (fan_in, fan_out), jnp.float32, -bound, bound)
        b = jax.random.uniform(kb, (1, fan_out), jnp.float32, -bound, bound)
        return w, b

    wq, bq = lin(ks[0], D, D)
    wk, bk = lin(ks[1], D, D)
    wv, bv = lin(ks[2], D, D)
    wo, bo = lin(ks[3], D, D)
    w1, b1 = lin(ks[4], D, DFF)
    w2, b2 = lin(ks[5], DFF, D)
    ln1_g = jnp.ones((1, D), jnp.float32)
    ln1_b = jnp.zeros((1, D), jnp.float32)
    ln2_g = jnp.ones((1, D), jnp.float32)
    ln2_b = jnp.zeros((1, D), jnp.float32)
    return [ln1_g, ln1_b, wq, bq, wk, bk, wv, bv, wo, bo,
            ln2_g, ln2_b, w1, b1, w2, b2]


def reference(x, mask, params):
    (ln1_g, ln1_b, wq, bq, wk, bk, wv, bv, wo, bo,
     ln2_g, ln2_b, w1, b1, w2, b2) = params

    xn = _layer_norm(x, ln1_g, ln1_b)
    q = (xn @ wq + bq).reshape(B, S, H, DK).transpose(0, 2, 1, 3)
    k = (xn @ wk + bk).reshape(B, S, H, DK).transpose(0, 2, 1, 3)
    v = (xn @ wv + bv).reshape(B, S, H, DK).transpose(0, 2, 1, 3)
    s = jnp.einsum("bhqd,bhkd->bhqk", q, k) / math.sqrt(DK)
    s = jnp.where(mask[:, None] > 0, s, NEG_INF)          # (B,1,S) -> (B,1,1,S)
    p = jax.nn.softmax(s, axis=-1)
    o = jnp.einsum("bhqk,bhkd->bhqd", p, v).transpose(0, 2, 1, 3).reshape(B, S, D)
    x1 = x + (o @ wo + bo)

    xn2 = _layer_norm(x1, ln2_g, ln2_b)
    ff = jnp.maximum(xn2 @ w1 + b1, 0.0) @ w2 + b2
    return x1 + ff


if __name__ == "__main__":
    key = jax.random.PRNGKey(0)
    kx, kp = jax.random.split(key)

    x = jax.random.normal(kx, (B, S, D), jnp.float32)
    # key-padding mask: batch 0 attends to all 8 positions, batch 1 to first 5
    lens = jnp.array([8, 5], jnp.int32)
    key_pos = jnp.arange(S)[None, None, :]                      # (1, 1, S)
    mask = (key_pos < lens[:, None, None]).astype(jnp.float32)  # (B, 1, S)

    params = init_params(kp)

    out = jax.block_until_ready(attending_layer(x, mask, params))

    ref = reference(x, mask, params)
    assert out.shape == (B, S, D) and out.dtype == jnp.float32
    assert jnp.allclose(out, ref, atol=1e-4, rtol=1e-4), \
        f"max abs err {jnp.max(jnp.abs(out - ref))}"

    print("KERNEL_OK")
</pallas_src>

<mosaic_0001>
module attributes {stable_mosaic.version = 11 : i64} {
  func.func @attending_layer_kernel(%arg0: i32, %arg1: memref<2x8x32xf32, #tpu.memory_space<vmem>>, %arg2: memref<64x64xf32, #tpu.memory_space<vmem>>, %arg3: memref<8x128xf32, #tpu.memory_space<vmem>>, %arg4: memref<64x224xf32, #tpu.memory_space<vmem>>, %arg5: memref<2x8x32xf32, #tpu.memory_space<vmem>>) attributes {dimension_semantics = [#tpu.dimension_semantics<arbitrary>], iteration_bounds = array<i64: 1>, scalar_prefetch = 0 : i64, scratch_operands = 0 : i64, tpu.core_type = #tpu.core_type<tc>, window_params = [{pipeline_mode = #tpu.pipeline_mode<synchronous>, transform_indices = @transform_0, window_bounds = array<i64: 2, 8, 32>}, {pipeline_mode = #tpu.pipeline_mode<synchronous>, transform_indices = @transform_1, window_bounds = array<i64: 64, 64>}, {pipeline_mode = #tpu.pipeline_mode<synchronous>, transform_indices = @transform_2, window_bounds = array<i64: 8, 128>}, {pipeline_mode = #tpu.pipeline_mode<synchronous>, transform_indices = @transform_3, window_bounds = array<i64: 64, 224>}, {pipeline_mode = #tpu.pipeline_mode<synchronous>, transform_indices = @transform_4, window_bounds = array<i64: 2, 8, 32>}]} {
    %c0 = arith.constant 0 : index
    %c0_0 = arith.constant 0 : index
    %c0_1 = arith.constant 0 : index
    %0 = vector.load %arg1[%c0, %c0_0, %c0_1] : memref<2x8x32xf32, #tpu.memory_space<vmem>>, vector<2x8x32xf32>
    %1 = vector.shape_cast %0 : vector<2x8x32xf32> to vector<16x32xf32>
    %c0_2 = arith.constant 0 : index
    %c0_3 = arith.constant 0 : index
    %2 = vector.load %arg3[%c0_2, %c0_3] : memref<8x128xf32, #tpu.memory_space<vmem>>, vector<8x128xf32>
    %3 = vector.extract_strided_slice %2 {offsets = [0, 0], sizes = [1, 32], strides = [1, 1]} : vector<8x128xf32> to vector<1x32xf32>
    %4 = vector.extract_strided_slice %2 {offsets = [1, 0], sizes = [1, 32], strides = [1, 1]} : vector<8x128xf32> to vector<1x32xf32>
    %5 = vector.extract_strided_slice %2 {offsets = [2, 0], sizes = [1, 96], strides = [1, 1]} : vector<8x128xf32> to vector<1x96xf32>
    %6 = vector.extract_strided_slice %2 {offsets = [3, 0], sizes = [1, 32], strides = [1, 1]} : vector<8x128xf32> to vector<1x32xf32>
    %7 = vector.extract_strided_slice %2 {offsets = [4, 0], sizes = [1, 32], strides = [1, 1]} : vector<8x128xf32> to vector<1x32xf32>
    %8 = vector.extract_strided_slice %2 {offsets = [5, 0], sizes = [1, 32], strides = [1, 1]} : vector<8x128xf32> to vector<1x32xf32>
    %9 = vector.extract_strided_slice %2 {offsets = [6, 0], sizes = [1, 64], strides = [1, 1]} : vector<8x128xf32> to vector<1x64xf32>
    %10 = vector.extract_strided_slice %2 {offsets = [7, 0], sizes = [1, 32], strides = [1, 1]} : vector<8x128xf32> to vector<1x32xf32>
    %c0_4 = arith.constant 0 : index
    %c0_5 = arith.constant 0 : index
    %11 = vector.load %arg4[%c0_4, %c0_5] : memref<64x224xf32, #tpu.memory_space<vmem>>, vector<64x224xf32>
    %12 = vector.extract_strided_slice %11 {offsets = [0, 0], sizes = [32, 96], strides = [1, 1]} : vector<64x224xf32> to vector<32x96xf32>
    %13 = vector.extract_strided_slice %11 {offsets = [0, 96], sizes = [32, 32], strides = [1, 1]} : vector<64x224xf32> to vector<32x32xf32>
    %14 = vector.extract_strided_slice %11 {offsets = [0, 128], sizes = [32, 64], strides = [1, 1]} : vector<64x224xf32> to vector<32x64xf32>
    %15 = vector.extract_strided_slice %11 {offsets = [0, 192], sizes = [64, 32], strides = [1, 1]} : vector<64x224xf32> to vector<64x32xf32>
    %cst = arith.constant dense<0.000000e+00> : vector<16xf32>
    %16 = vector.multi_reduction <add>, %1, %cst [1] : vector<16x32xf32> to vector<16xf32>
    %17 = vector.shape_cast %16 : vector<16xf32> to vector<16x1xf32>
    %cst_6 = arith.constant 3.200000e+01 : f32
    %18 = vector.broadcast %cst_6 : f32 to vector<16x1xf32>
    %19 = arith.divf %17, %18 : vector<16x1xf32>
    %20 = vector.broadcast %19 : vector<16x1xf32> to vector<16x32xf32>
    %21 = arith.subf %1, %20 : vector<16x32xf32>
    %22 = arith.mulf %21, %21 : vector<16x32xf32>
    %cst_7 = arith.constant dense<0.000000e+00> : vector<16xf32>
    %23 = vector.multi_reduction <add>, %22, %cst_7 [1] : vector<16x32xf32> to vector<16xf32>
    %24 = vector.shape_cast %23 : vector<16xf32> to vector<16x1xf32>
    %cst_8 = arith.constant 3.200000e+01 : f32
    %25 = vector.broadcast %cst_8 : f32 to vector<16x1xf32>
    %26 = arith.divf %24, %25 : vector<16x1xf32>
    %27 = vector.broadcast %19 : vector<16x1xf32> to vector<16x32xf32>
    %28 = arith.subf %1, %27 : vector<16x32xf32>
    %cst_9 = arith.constant 9.99999997E-7 : f32
    %29 = vector.broadcast %cst_9 : f32 to vector<16x1xf32>
    %30 = arith.addf %26, %29 : vector<16x1xf32>
    %31 = math.rsqrt %30 : vector<16x1xf32>
    %32 = vector.broadcast %31 : vector<16x1xf32> to vector<16x32xf32>
    %33 = arith.mulf %28, %32 : vector<16x32xf32>
    %34 = vector.broadcast %3 : vector<1x32xf32> to vector<16x32xf32>
    %35 = arith.mulf %33, %34 : vector<16x32xf32>
    %36 = vector.broadcast %4 : vector<1x32xf32> to vector<16x32xf32>
    %37 = arith.addf %35, %36 : vector<16x32xf32>
    %cst_10 = arith.constant dense<0.000000e+00> : vector<16x96xf32>
    %38 = tpu.matmul %37, %12, %cst_10 {dimension_numbers = #tpu.dot_dimension_numbers<[1], [0], [0], [1], [0, 0, 1, 1], [], []>} : vector<16x32xf32>, vector<32x96xf32>, vector<16x96xf32> -> vector<16x96xf32>
    %39 = vector.broadcast %5 : vector<1x96xf32> to vector<16x96xf32>
    %40 = arith.addf %38, %39 : vector<16x96xf32>
    %41 = vector.extract_strided_slice %40 {offsets = [0, 0], sizes = [16, 32], strides = [1, 1]} : vector<16x96xf32> to vector<16x32xf32>
    %42 = vector.extract_strided_slice %40 {offsets = [0, 32], sizes = [16, 32], strides = [1, 1]} : vector<16x96xf32> to vector<16x32xf32>
    %43 = vector.extract_strided_slice %40 {offsets = [0, 64], sizes = [16, 32], strides = [1, 1]} : vector<16x96xf32> to vector<16x32xf32>
    %44 = vector.extract_strided_slice %41 {offsets = [0, 0], sizes = [16, 8], strides = [1, 1]} : vector<16x32xf32> to vector<16x8xf32>
    %45 = vector.extract_strided_slice %41 {offsets = [0, 8], sizes = [16, 8], strides = [1, 1]} : vector<16x32xf32> to vector<16x8xf32>
    %46 = vector.extract_strided_slice %41 {offsets = [0, 16], sizes = [16, 8], strides = [1, 1]} : vector<16x32xf32> to vector<16x8xf32>
    %47 = vector.extract_strided_slice %41 {offsets = [0, 24], sizes = [16, 8], strides = [1, 1]} : vector<16x32xf32> to vector<16x8xf32>
    %48 = tpu.concatenate %44, %45, %46, %47 in 0 : vector<16x8xf32>, vector<16x8xf32>, vector<16x8xf32>, vector<16x8xf32> -> vector<64x8xf32>
    %49 = vector.extract_strided_slice %42 {offsets = [0, 0], sizes = [16, 8], strides = [1, 1]} : vector<16x32xf32> to vector<16x8xf32>
    %50 = vector.extract_strided_slice %42 {offsets = [0, 8], sizes = [16, 8], strides = [1, 1]} : vector<16x32xf32> to vector<16x8xf32>
    %51 = vector.extract_strided_slice %42 {offsets = [0, 16], sizes = [16, 8], strides = [1, 1]} : vector<16x32xf32> to vector<16x8xf32>
    %52 = vector.extract_strided_slice %42 {offsets = [0, 24], sizes = [16, 8], strides = [1, 1]} : vector<16x32xf32> to vector<16x8xf32>
    %53 = tpu.concatenate %49, %50, %51, %52 in 0 : vector<16x8xf32>, vector<16x8xf32>, vector<16x8xf32>, vector<16x8xf32> -> vector<64x8xf32>
    %54 = vector.extract_strided_slice %43 {offsets = [0, 0], sizes = [16, 8], strides = [1, 1]} : vector<16x32xf32> to vector<16x8xf32>
    %55 = vector.extract_strided_slice %43 {offsets = [0, 8], sizes = [16, 8], strides = [1, 1]} : vector<16x32xf32> to vector<16x8xf32>
    %56 = vector.extract_strided_slice %43 {offsets = [0, 16], sizes = [16, 8], strides = [1, 1]} : vector<16x32xf32> to vector<16x8xf32>
    %57 = vector.extract_strided_slice %43 {offsets = [0, 24], sizes = [16, 8], strides = [1, 1]} : vector<16x32xf32> to vector<16x8xf32>
    %58 = tpu.concatenate %54, %55, %56, %57 in 0 : vector<16x8xf32>, vector<16x8xf32>, vector<16x8xf32>, vector<16x8xf32> -> vector<64x8xf32>
    %cst_11 = arith.constant dense<0.000000e+00> : vector<64x64xf32>
    %59 = tpu.matmul %48, %53, %cst_11 {dimension_numbers = #tpu.dot_dimension_numbers<[1], [1], [0], [0], [0, 0, 1, 0], [], []>} : vector<64x8xf32>, vector<64x8xf32>, vector<64x64xf32> -> vector<64x64xf32>
    %c0_12 = arith.constant 0 : index
    %c0_13 = arith.constant 0 : index
    %60 = vector.load %arg2[%c0_12, %c0_13] : memref<64x64xf32, #tpu.memory_space<vmem>>, vector<64x64xf32>
    %61 = arith.addf %59, %60 : vector<64x64xf32>
    %cst_14 = arith.constant dense<0xFF800000> : vector<64xf32>
    %62 = vector.multi_reduction <maximumf>, %61, %cst_14 [1] : vector<64x64xf32> to vector<64xf32>
    %63 = vector.shape_cast %62 : vector<64xf32> to vector<64x1xf32>
    %64 = vector.broadcast %63 : vector<64x1xf32> to vector<64x64xf32>
    %65 = arith.subf %61, %64 : vector<64x64xf32>
    %66 = math.exp %65 : vector<64x64xf32>
    %cst_15 = arith.constant dense<0.000000e+00> : vector<64xf32>
    %67 = vector.multi_reduction <add>, %66, %cst_15 [1] : vector<64x64xf32> to vector<64xf32>
    %68 = vector.shape_cast %67 : vector<64xf32> to vector<64x1xf32>
    %69 = tpu.reciprocal %68 : vector<64x1xf32> -> vector<64x1xf32>
    %70 = vector.broadcast %69 : vector<64x1xf32> to vector<64x64xf32>
    %71 = arith.mulf %66, %70 : vector<64x64xf32>
    %cst_16 = arith.constant dense<0.000000e+00> : vector<64x8xf32>
    %72 = tpu.matmul %71, %58, %cst_16 {dimension_numbers = #tpu.dot_dimension_numbers<[1], [0], [0], [1], [0, 0, 1, 1], [], []>} : vector<64x64xf32>, vector<64x8xf32>, vector<64x8xf32> -> vector<64x8xf32>
    %73 = vector.extract_strided_slice %72 {offsets = [0, 0], sizes = [16, 8], strides = [1, 1]} : vector<64x8xf32> to vector<16x8xf32>
    %74 = vector.extract_strided_slice %72 {offsets = [16, 0], sizes = [16, 8], strides = [1, 1]} : vector<64x8xf32> to vector<16x8xf32>
    %75 = vector.extract_strided_slice %72 {offsets = [32, 0], sizes = [16, 8], strides = [1, 1]} : vector<64x8xf32> to vector<16x8xf32>
    %76 = vector.extract_strided_slice %72 {offsets = [48, 0], sizes = [16, 8], strides = [1, 1]} : vector<64x8xf32> to vector<16x8xf32>
    %77 = tpu.concatenate %73, %74, %75, %76 in 1 : vector<16x8xf32>, vector<16x8xf32>, vector<16x8xf32>, vector<16x8xf32> -> vector<16x32xf32>
    %cst_17 = arith.constant dense<0.000000e+00> : vector<16x32xf32>
    %78 = tpu.matmul %77, %13, %cst_17 {dimension_numbers = #tpu.dot_dimension_numbers<[1], [0], [0], [1], [0, 0, 1, 1], [], []>} : vector<16x32xf32>, vector<32x32xf32>, vector<16x32xf32> -> vector<16x32xf32>
    %79 = arith.addf %1, %78 : vector<16x32xf32>
    %80 = vector.broadcast %6 : vector<1x32xf32> to vector<16x32xf32>
    %81 = arith.addf %79, %80 : vector<16x32xf32>
    %cst_18 = arith.constant dense<0.000000e+00> : vector<16xf32>
    %82 = vector.multi_reduction <add>, %81, %cst_18 [1] : vector<16x32xf32> to vector<16xf32>
    %83 = vector.shape_cast %82 : vector<16xf32> to vector<16x1xf32>
    %cst_19 = arith.constant 3.200000e+01 : f32
    %84 = vector.broadcast %cst_19 : f32 to vector<16x1xf32>
    %85 = arith.divf %83, %84 : vector<16x1xf32>
    %86 = vector.broadcast %85 : vector<16x1xf32> to vector<16x32xf32>
    %87 = arith.subf %81, %86 : vector<16x32xf32>
    %88 = arith.mulf %87, %87 : vector<16x32xf32>
    %cst_20 = arith.constant dense<0.000000e+00> : vector<16xf32>
    %89 = vector.multi_reduction <add>, %88, %cst_20 [1] : vector<16x32xf32> to vector<16xf32>
    %90 = vector.shape_cast %89 : vector<16xf32> to vector<16x1xf32>
    %cst_21 = arith.constant 3.200000e+01 : f32
    %91 = vector.broadcast %cst_21 : f32 to vector<16x1xf32>
    %92 = arith.divf %90, %91 : vector<16x1xf32>
    %93 = vector.broadcast %85 : vector<16x1xf32> to vector<16x32xf32>
    %94 = arith.subf %81, %93 : vector<16x32xf32>
    %cst_22 = arith.constant 9.99999997E-7 : f32
    %95 = vector.broadcast %cst_22 : f32 to vector<16x1xf32>
    %96 = arith.addf %92, %95 : vector<16x1xf32>
    %97 = math.rsqrt %96 : vector<16x1xf32>
    %98 = vector.broadcast %97 : vector<16x1xf32> to vector<16x32xf32>
    %99 = arith.mulf %94, %98 : vector<16x32xf32>
    %100 = vector.broadcast %7 : vector<1x32xf32> to vector<16x32xf32>
    %101 = arith.mulf %99, %100 : vector<16x32xf32>
    %102 = vector.broadcast %8 : vector<1x32xf32> to vector<16x32xf32>
    %103 = arith.addf %101, %102 : vector<16x32xf32>
    %cst_23 = arith.constant dense<0.000000e+00> : vector<16x64xf32>
    %104 = tpu.matmul %103, %14, %cst_23 {dimension_numbers = #tpu.dot_dimension_numbers<[1], [0], [0], [1], [0, 0, 1, 1], [], []>} : vector<16x32xf32>, vector<32x64xf32>, vector<16x64xf32> -> vector<16x64xf32>
    %105 = vector.broadcast %9 : vector<1x64xf32> to vector<16x64xf32>
    %106 = arith.addf %104, %105 : vector<16x64xf32>
    %cst_24 = arith.constant 0.000000e+00 : f32
    %107 = vector.broadcast %cst_24 : f32 to vector<16x64xf32>
    %108 = arith.maximumf %106, %107 : vector<16x64xf32>
    %cst_25 = arith.constant dense<0.000000e+00> : vector<16x32xf32>
    %109 = tpu.matmul %108, %15, %cst_25 {dimension_numbers = #tpu.dot_dimension_numbers<[1], [0], [0], [1], [0, 0, 1, 1], [], []>} : vector<16x64xf32>, vector<64x32xf32>, vector<16x32xf32> -> vector<16x32xf32>
    %110 = vector.broadcast %10 : vector<1x32xf32> to vector<16x32xf32>
    %111 = arith.addf %109, %110 : vector<16x32xf32>
    %112 = arith.addf %81, %111 : vector<16x32xf32>
    %113 = vector.shape_cast %112 : vector<16x32xf32> to vector<2x8x32xf32>
    %c0_26 = arith.constant 0 : index
    %c0_27 = arith.constant 0 : index
    %c0_28 = arith.constant 0 : index
    %114 = vector.load %arg5[%c0_26, %c0_27, %c0_28] : memref<2x8x32xf32, #tpu.memory_space<vmem>>, vector<2x8x32xf32>
    tpu.vector_store %arg5[%c0_26, %c0_27, %c0_28], %113 {strides = array<i32>} : memref<2x8x32xf32, #tpu.memory_space<vmem>>, vector<2x8x32xf32>,
    return
  }
  func.func @transform_0(%arg0: i32) -> (i32, i32, i32) {
    %c0_i32 = arith.constant 0 : i32
    %c0_i32_0 = arith.constant 0 : i32
    %c0_i32_1 = arith.constant 0 : i32
    %c0_i32_2 = arith.constant 0 : i32
    return %c0_i32, %c0_i32_0, %c0_i32_1 : i32, i32, i32
  }
  func.func @transform_1(%arg0: i32) -> (i32, i32) {
    %c0_i32 = arith.constant 0 : i32
    %c0_i32_0 = arith.constant 0 : i32
    %c0_i32_1 = arith.constant 0 : i32
    return %c0_i32, %c0_i32_0 : i32, i32
  }
  func.func @transform_2(%arg0: i32) -> (i32, i32) {
    %c0_i32 = arith.constant 0 : i32
    %c0_i32_0 = arith.constant 0 : i32
    %c0_i32_1 = arith.constant 0 : i32
    return %c0_i32, %c0_i32_0 : i32, i32
  }
  func.func @transform_3(%arg0: i32) -> (i32, i32) {
    %c0_i32 = arith.constant 0 : i32
    %c0_i32_0 = arith.constant 0 : i32
    %c0_i32_1 = arith.constant 0 : i32
    return %c0_i32, %c0_i32_0 : i32, i32
  }
  func.func @transform_4(%arg0: i32) -> (i32, i32, i32) {
    %c0_i32 = arith.constant 0 : i32
    %c0_i32_0 = arith.constant 0 : i32
    %c0_i32_1 = arith.constant 0 : i32
    %c0_i32_2 = arith.constant 0 : i32
    return %c0_i32, %c0_i32_0, %c0_i32_1 : i32, i32, i32
  }
}

</mosaic_0001>

<llo_original>
// kernel: tpu_custom_call.1
$region0: #{tpu_custom_call.1}
  #allocation0 [shape = 'u32[]', space=smem, size = 0x4, offset = 0x4, fixed_abs, tag = 'smem constant byte address 0x4 - core index']
  #allocation1 [shape = 'u32[144,128]{1,0:T(1,128)}', space=vmem, size = 0x12000, scoped, tag = 'internal scratch']
  %s0 = inlined_call_operand.hbm [shape: f32[2,8,32], index: 0, kind: input, shape index: {}]
  %s1 = inlined_call_operand.hbm [shape: f32[64,64], index: 1, kind: input, shape index: {}]
  %s2 = inlined_call_operand.hbm [shape: f32[8,128], index: 2, kind: input, shape index: {}]
  %s3 = inlined_call_operand.hbm [shape: f32[64,224], index: 3, kind: input, shape index: {}]
  %s4 = inlined_call_operand.hbm [shape: f32[2,8,32], index: 4, kind: output, shape index: {}]
  %s5 = sld [smem:[#allocation0]]
  $region42: #{tpu_custom_call.1} parent=0
    _
  %s7 = ssub.s32 1, %s5
  %s8 = scalar_select 0, %s7, %s5
  $region1: #{tpu_custom_call.1} parent=0
    #allocation2 [shape = 'u8[8192]{0}', space=vmem, size = 0x2000, scoped, tag = 'input window, operand 0, single buffered']
    #allocation3 [shape = 's32[1]{0}', space=sflag, size = 0x4, scoped, tag = 'scoped memory for tpu_custom_call.1']
    #allocation4 [shape = 's32[1]{0}', space=sflag, size = 0x4, scoped, tag = 'scoped memory for tpu_custom_call.1']
    #allocation5 [shape = 'u8[32768]{0}', space=vmem, size = 0x8000, scoped, tag = 'input window, operand 1, single buffered']
    #allocation6 [shape = 's32[1]{0}', space=sflag, size = 0x4, scoped, tag = 'scoped memory for tpu_custom_call.1']
    #allocation7 [shape = 'u8[4096]{0}', space=vmem, size = 0x1000, scoped, tag = 'input window, operand 2, single buffered']
    #allocation8 [shape = 'u8[65536]{0}', space=vmem, size = 0x10000, scoped, tag = 'input window, operand 3, single buffered']
    #allocation9 [shape = 's32[1]{0}', space=sflag, size = 0x4, scoped, tag = 'scoped memory for tpu_custom_call.1']
    #allocation10 [shape = 'u8[8192]{0}', space=vmem, size = 0x2000, scoped, tag = 'output window, operand 0, single buffered']
    %9 = vsyncpa [#allocation3], 0
    %10 = vsyncpa [#allocation6], 0
    %11 = vsyncpa [#allocation9], 0
    %12 = vsyncpa [#allocation4], 0
    // Predicated region
    $region2: #{tpu_custom_call.1} parent=1 // pred_check
      _
    $region3: #{tpu_custom_call.1} parent=1 // pred_check_branch
      %14 = sbr.rel (0) target = $region5
    $region4: #{tpu_custom_call.1} parent=1 // pred_region
      %s16 = ssub.s32 256, 256
      %17 = vsyncadd [#allocation3], %s16
      %s18 = sshll.u32 [#allocation2], 4
      %s19 = int_to_ptr.vmem [resolvable:$true] %s18
      %24 = dma.hbm_to_vmem [thread:$0]  %s0, 256, %s19, [#allocation3], 128, 128, 8
    $region5: #{tpu_custom_call.1} parent=1 // pred_fallthru
      _
    // Predicated region
    $region6: #{tpu_custom_call.1} parent=1 // pred_check
      _
    $region7: #{tpu_custom_call.1} parent=1 // pred_check_branch
      %26 = sbr.rel (0) target = $region9
    $region8: #{tpu_custom_call.1} parent=1 // pred_region
      %s28 = ssub.s32 1024, 1024
      %29 = vsyncadd [#allocation6], %s28
      %s30 = sshll.u32 [#allocation5], 4
      %s31 = int_to_ptr.vmem [resolvable:$true] %s30
      %36 = dma.hbm_to_vmem [thread:$0]  %s1, 1024, %s31, [#allocation6], 128, 128, 8
    $region9: #{tpu_custom_call.1} parent=1 // pred_fallthru
      _
    // Predicated region
    $region10: #{tpu_custom_call.1} parent=1 // pred_check
      _
    $region11: #{tpu_custom_call.1} parent=1 // pred_check_branch
      %38 = sbr.rel (0) target = $region13
    $region12: #{tpu_custom_call.1} parent=1 // pred_region
      %s40 = ssub.s32 128, 128
      %41 = vsyncadd [#allocation6], %s40
      %s43 = sshll.u32 [#allocation7], 4
      %s44 = int_to_ptr.vmem [resolvable:$true] %s43
      %46 = dma.hbm_to_vmem [thread:$0]  %s2, 128, %s44, [#allocation6]
    $region13: #{tpu_custom_call.1} parent=1 // pred_fallthru
      _
    // Predicated region
    $region14: #{tpu_custom_call.1} parent=1 // pred_check
      _
    $region15: #{tpu_custom_call.1} parent=1 // pred_check_branch
      %48 = sbr.rel (0) target = $region17
    $region16: #{tpu_custom_call.1} parent=1 // pred_region
      %s50 = ssub.s32 2048, 2048
      %51 = vsyncadd [#allocation9], %s50
      %s52 = sshll.u32 [#allocation8], 4
      %s53 = int_to_ptr.vmem [resolvable:$true] %s52
      %58 = dma.hbm_to_vmem [thread:$0]  %s3, 2048, %s53, [#allocation9], 256, 256, 16
    $region17: #{tpu_custom_call.1} parent=1 // pred_fallthru
      _
    // Predicated region
    $region18: #{tpu_custom_call.1} parent=1 // pred_check
      _
    $region19: #{tpu_custom_call.1} parent=1 // pred_check_branch
      %60 = sbr.rel (0) target = $region21
    $region20: #{tpu_custom_call.1} parent=1 // pred_region
      %61 = dma.done [#allocation3], 256
    $region21: #{tpu_custom_call.1} parent=1 // pred_fallthru
      _
    // Predicated region
    $region22: #{tpu_custom_call.1} parent=1 // pred_check
      _
    $region23: #{tpu_custom_call.1} parent=1 // pred_check_branch
      %63 = sbr.rel (0) target = $region25
    $region24: #{tpu_custom_call.1} parent=1 // pred_region
      %64 = dma.done [#allocation6], 1024
    $region25: #{tpu_custom_call.1} parent=1 // pred_fallthru
      _
    // Predicated region
    $region26: #{tpu_custom_call.1} parent=1 // pred_check
      _
    $region27: #{tpu_custom_call.1} parent=1 // pred_check_branch
      %66 = sbr.rel (0) target = $region29
    $region28: #{tpu_custom_call.1} parent=1 // pred_region
      %67 = dma.done [#allocation6], 128
    $region29: #{tpu_custom_call.1} parent=1 // pred_fallthru
      _
    // Predicated region
    $region30: #{tpu_custom_call.1} parent=1 // pred_check
      _
    $region31: #{tpu_custom_call.1} parent=1 // pred_check_branch
      %69 = sbr.rel (0) target = $region33
    $region32: #{tpu_custom_call.1} parent=1 // pred_region
      %70 = dma.done [#allocation9], 2048
    $region33: #{tpu_custom_call.1} parent=1 // pred_fallthru
      _
    %v71 = vld [vmem:[#allocation2] sm:$0xff]
    %v72 = vld [vmem:[#allocation2 + $0x8] sm:$0xff]
    %v73 = vld [vmem:[#allocation7] sm:$0xff]
    %v74 = vld [vmem:[#allocation8] sm:$0xff]
    %v75 = vld [vmem:[#allocation8 + $0x8] sm:$0xff]
    %v76 = vld [vmem:[#allocation8 + $0x10] sm:$0xff]
    %v77 = vld [vmem:[#allocation8 + $0x18] sm:$0xff]
    %v78 = vld [vmem:[#allocation8 + $0x20] sm:$0xff]
    %v79 = vld [vmem:[#allocation8 + $0x28] sm:$0xff]
    %v80 = vld [vmem:[#allocation8 + $0x30] sm:$0xff]
    %v81 = vld [vmem:[#allocation8 + $0x38] sm:$0xff]
    %v82 = vld [vmem:[#allocation8 + $0x48] sm:$0xff]
    %v83 = vld [vmem:[#allocation8 + $0x58] sm:$0xff]
    %v84 = vld [vmem:[#allocation8 + $0x68] sm:$0xff]
    %v85 = vld [vmem:[#allocation8 + $0x78] sm:$0xff]
    %vm86 = vcmask 261120
    %v87 = vsel %vm86, %v71, 0.0
    %88 = vadd.xlane.f32.xlu0 %v87
    %v89 = vpop.xlane.xlu0 %88
    %v90 = vsel %vm86, %v72, 0.0
    %91 = vadd.xlane.f32.xlu0 %v90
    %v92 = vpop.xlane.xlu0 %91
    %v93 = vrcp.pop 32.0
    %v94 = vmul.f32 %v89, %v93
    %v95 = vmul.f32 %v92, %v93
    %v96 = vsub.f32 %v71, %v94
    %v97 = vsub.f32 %v72, %v95
    %v98 = vmul.f32 %v96, %v96
    %v99 = vmul.f32 %v97, %v97
    %v100 = vsel %vm86, %v98, 0.0
    %101 = vadd.xlane.f32.xlu0 %v100
    %v102 = vpop.xlane.xlu0 %101
    %v103 = vsel %vm86, %v99, 0.0
    %104 = vadd.xlane.f32.xlu0 %v103
    %v105 = vpop.xlane.xlu0 %104
    %v106 = vmul.f32 %v102, %v93
    %v107 = vmul.f32 %v105, %v93
    %v108 = vadd.f32 %v106, 1e-06
    %v109 = vadd.f32 %v107, 1e-06
    %v110 = vrsqrt.pop %v108
    %v111 = vrsqrt.pop %v109
    %v112 = vmul.f32 %v96, %v110
    %v113 = vmul.f32 %v97, %v111
    %v114 = vlaneseq
    %v115 = vshrl.u32 %v114, 7
    %v116 = vsub.s32 0, %v115
    %v117 = vrot.slane %v73, %v116
    %v118 = vmul.f32 %v112, %v117
    %v119 = vmul.f32 %v113, %v117
    %v120 = vlaneseq
    %v121 = vshrl.u32 %v120, 7
    %v122 = vsub.s32 1, %v121
    %v123 = vrot.slane %v73, %v122
    %v124 = vadd.f32 %v118, %v123
    %v125 = vadd.f32 %v119, %v123
    %v126 = vlaneseq
    %v127 = vshrl.u32 %v126, 7
    %v128 = vsub.s32 2, %v127
    %v129 = vrot.slane %v73, %v128
    %v131 = vsel %vm86, %v124, 0
    %v134 = vsel %vm86, %v125, 0
    %136 = vmatprep.subr.mxu0 0.0
    %137 = vmatpush1.msra.mxu0 %v74
    %138 = vmatprep.subr.mxu0 0.0
    %139 = vmatpush1.msra.mxu0 %v76
    %140 = vmatprep.subr.mxu0 0.0
    %141 = vmatpush1.msra.mxu0 %v78
    %142 = vmatprep.subr.mxu0 0.0
    %143 = vmatpush1.msra.mxu0 %v80
    %144 = vmatprep.subr.mxu0 0.0
    %145 = vmatpush1.msra.mxu0 0.0
    %146 = vmatprep.subr.mxu0 0.0
    %147 = vmatpush1.msra.mxu0 0.0
    %148 = vmatprep.subr.mxu0 0.0
    %149 = vmatpush1.msra.mxu0 0.0
    %150 = vmatprep.subr.mxu0 0.0
    %151 = vmatpush1.msra.mxu0 0.0
    %152 = vmatprep.subr.mxu0 0.0
    %153 = vmatpush1.msra.mxu0 0.0
    %154 = vmatprep.subr.mxu0 0.0
    %155 = vmatpush1.msra.mxu0 0.0
    %156 = vmatprep.subr.mxu0 0.0
    %157 = vmatpush1.msra.mxu0 0.0
    %158 = vmatprep.subr.mxu0 0.0
    %159 = vmatpush1.msra.mxu0 0.0
    %160 = vmatprep.subr.mxu0 0.0
    %161 = vmatpush1.msra.mxu0 0.0
    %162 = vmatprep.subr.mxu0 0.0
    %163 = vmatpush1.msra.mxu0 0.0
    %164 = vmatprep.subr.mxu0 0.0
    %165 = vmatpush1.msra.mxu0 0.0
    %166 = vmatprep.subr.mxu0 0.0
    %167 = vmatpush1.msra.mxu0 0.0
    %168 = vmatprep.subr.mxu0 0.0
    %169 = vmatpush1.msra.mxu0 0.0
    %170 = vmatprep.subr.mxu0 0.0
    %171 = vmatpush1.msra.mxu0 0.0
    %172 = vmatprep.subr.mxu0 0.0
    %173 = vmatpush1.msra.mxu0 0.0
    %174 = vmatprep.subr.mxu0 0.0
    %175 = vmatpush1.msra.mxu0 0.0
    %176 = vmatprep.subr.mxu0 0.0
    %177 = vmatpush1.msra.mxu0 0.0
    %178 = vmatprep.subr.mxu0 0.0
    %179 = vmatpush1.msra.mxu0 0.0
    %180 = vmatprep.subr.mxu0 0.0
    %181 = vmatpush1.msra.mxu0 0.0
    %182 = vmatprep.subr.mxu0 0.0
    %183 = vmatpush1.msra.mxu0 0.0
    %184 = vmatprep.subr.mxu0 0.0
    %185 = vmatpush1.msra.mxu0 0.0
    %186 = vmatprep.subr.mxu0 0.0
    %187 = vmatpush1.msra.mxu0 0.0
    %188 = vmatprep.subr.mxu0 0.0
    %189 = vmatpush1.msra.mxu0 0.0
    %190 = vmatprep.subr.mxu0 0.0
    %191 = vmatpush1.msra.mxu0 0.0
    %192 = vmatprep.subr.mxu0 0.0
    %193 = vmatpush1.msra.mxu0 0.0
    %194 = vmatprep.subr.mxu0 0.0
    %195 = vmatpush1.msra.mxu0 0.0
    %196 = vmatprep.subr.mxu0 0.0
    %197 = vmatpush1.msra.mxu0 0.0
    %198 = vmatprep.subr.mxu0 0.0
    %199 = vmatpush1.msra.mxu0 0.0
    %200 = vmatprep.mubr.f32.mxu0 0.0
    %201 = vmatmul.mubr.f32.gmra.mrb[0].mxu0 %v131
    %v202 = vpop.f32.mrb[0].mxu0
    %v203 = vadd.f32 %v129, %v202
    %v204 = vpop.f32.mrb[0].mxu0
    %205 = vmatprep.mubr.f32.mxu0 0.0
    %206 = vmatmul.mubr.f32.gmra.mrb[0].mxu0 %v134
    %v207 = vpop.f32.mrb[0].mxu0
    %v208 = vadd.f32 %v129, %v207
    %v209 = vpop.f32.mrb[0].mxu0
    %210 = vdwg.mxu0
    %213 = vrot.lane.b32.xlu0 %v203, 120
    %v214 = vpop.permute.xlu0 %213
    %215 = vrot.lane.b32.xlu0 %v208, 120
    %v216 = vpop.permute.xlu0 %215
    %217 = vrot.lane.b32.xlu0 %v203, 112
    %v218 = vpop.permute.xlu0 %217
    %219 = vrot.lane.b32.xlu0 %v208, 112
    %v220 = vpop.permute.xlu0 %219
    %221 = vrot.lane.b32.xlu0 %v203, 104
    %v222 = vpop.permute.xlu0 %221
    %223 = vrot.lane.b32.xlu0 %v208, 104
    %v224 = vpop.permute.xlu0 %223
    %v225 = vld [vmem:[#allocation5] sm:$0xff]
    %v226 = vld [vmem:[#allocation5 + $0x8] sm:$0xff]
    %v227 = vld [vmem:[#allocation5 + $0x10] sm:$0xff]
    %v228 = vld [vmem:[#allocation5 + $0x18] sm:$0xff]
    %v229 = vld [vmem:[#allocation5 + $0x20] sm:$0xff]
    %v230 = vld [vmem:[#allocation5 + $0x28] sm:$0xff]
    %v231 = vld [vmem:[#allocation5 + $0x30] sm:$0xff]
    %v232 = vld [vmem:[#allocation5 + $0x38] sm:$0xff]
    %233 = vrot.lane.b32.xlu0 %v203, 96
    %v234 = vpop.permute.xlu0 %233
    %235 = vrot.lane.b32.xlu0 %v208, 96
    %v236 = vpop.permute.xlu0 %235
    %237 = vrot.lane.b32.xlu0 %v214, 96
    %v238 = vpop.permute.xlu0 %237
    %239 = vrot.lane.b32.xlu0 %v216, 96
    %v240 = vpop.permute.xlu0 %239
    %241 = vrot.lane.b32.xlu0 %v218, 96
    %v242 = vpop.permute.xlu0 %241
    %243 = vrot.lane.b32.xlu0 %v220, 96
    %v244 = vpop.permute.xlu0 %243
    %245 = vrot.lane.b32.xlu0 %v222, 96
    %v246 = vpop.permute.xlu0 %245
    %247 = vrot.lane.b32.xlu0 %v224, 96
    %v248 = vpop.permute.xlu0 %247
    %vm249 = vcmask 64512
    %v250 = vsel %vm249, %v203, 0
    %v252 = vsel %vm249, %v208, 0
    %v254 = vsel %vm249, %v214, 0
    %v256 = vsel %vm249, %v216, 0
    %v258 = vsel %vm249, %v218, 0
    %v260 = vsel %vm249, %v220, 0
    %v262 = vsel %vm249, %v222, 0
    %v264 = vsel %vm249, %v224, 0
    %v266 = vsel %vm249, %v234, 0
    %v268 = vsel %vm249, %v236, 0
    %v270 = vsel %vm249, %v238, 0
    %v272 = vsel %vm249, %v240, 0
    %v274 = vsel %vm249, %v242, 0
    %v276 = vsel %vm249, %v244, 0
    %v278 = vsel %vm249, %v246, 0
    %v280 = vsel %vm249, %v248, 0
    %282 = vmatprep.subr.mxu0 0.0
    %283 = vmatpush1.xpose.msra.mxu0 %v266
    %284 = vmatprep.subr.mxu0 0.0
    %285 = vmatpush1.xpose.msra.mxu0 %v268
    %286 = vmatprep.subr.mxu0 0.0
    %287 = vmatpush1.xpose.msra.mxu0 %v270
    %288 = vmatprep.subr.mxu0 0.0
    %289 = vmatpush1.xpose.msra.mxu0 %v272
    %290 = vmatprep.subr.mxu0 0.0
    %291 = vmatpush1.xpose.msra.mxu0 %v274
    %292 = vmatprep.subr.mxu0 0.0
    %293 = vmatpush1.xpose.msra.mxu0 %v276
    %294 = vmatprep.subr.mxu0 0.0
    %295 = vmatpush1.xpose.msra.mxu0 %v278
    %296 = vmatprep.subr.mxu0 0.0
    %297 = vmatpush1.xpose.msra.mxu0 %v280
    %298 = vmatprep.subr.mxu0 0.0
    %299 = vmatpush1.xpose.msra.mxu0 0.0
    %300 = vmatprep.subr.mxu0 0.0
    %301 = vmatpush1.xpose.msra.mxu0 0.0
    %302 = vmatprep.subr.mxu0 0.0
    %303 = vmatpush1.xpose.msra.mxu0 0.0
    %304 = vmatprep.subr.mxu0 0.0
    %305 = vmatpush1.xpose.msra.mxu0 0.0
    %306 = vmatprep.subr.mxu0 0.0
    %307 = vmatpush1.xpose.msra.mxu0 0.0
    %308 = vmatprep.subr.mxu0 0.0
    %309 = vmatpush1.xpose.msra.mxu0 0.0
    %310 = vmatprep.subr.mxu0 0.0
    %311 = vmatpush1.xpose.msra.mxu0 0.0
    %312 = vmatprep.subr.mxu0 0.0
    %313 = vmatpush1.xpose.msra.mxu0 0.0
    %314 = vmatprep.subr.mxu0 0.0
    %315 = vmatpush1.xpose.msra.mxu0 0.0
    %316 = vmatprep.subr.mxu0 0.0
    %317 = vmatpush1.xpose.msra.mxu0 0.0
    %318 = vmatprep.subr.mxu0 0.0
    %319 = vmatpush1.xpose.msra.mxu0 0.0
    %320 = vmatprep.subr.mxu0 0.0
    %321 = vmatpush1.xpose.msra.mxu0 0.0
    %322 = vmatprep.subr.mxu0 0.0
    %323 = vmatpush1.xpose.msra.mxu0 0.0
    %324 = vmatprep.subr.mxu0 0.0
    %325 = vmatpush1.xpose.msra.mxu0 0.0
    %326 = vmatprep.subr.mxu0 0.0
    %327 = vmatpush1.xpose.msra.mxu0 0.0
    %328 = vmatprep.subr.mxu0 0.0
    %329 = vmatpush1.xpose.msra.mxu0 0.0
    %330 = vmatprep.subr.mxu0 0.0
    %331 = vmatpush1.xpose.msra.mxu0 0.0
    %332 = vmatprep.subr.mxu0 0.0
    %333 = vmatpush1.xpose.msra.mxu0 0.0
    %334 = vmatprep.subr.mxu0 0.0
    %335 = vmatpush1.xpose.msra.mxu0 0.0
    %336 = vmatprep.subr.mxu0 0.0
    %337 = vmatpush1.xpose.msra.mxu0 0.0
    %338 = vmatprep.subr.mxu0 0.0
    %339 = vmatpush1.xpose.msra.mxu0 0.0
    %340 = vmatprep.subr.mxu0 0.0
    %341 = vmatpush1.xpose.msra.mxu0 0.0
    %342 = vmatprep.subr.mxu0 0.0
    %343 = vmatpush1.xpose.msra.mxu0 0.0
    %344 = vmatprep.subr.mxu0 0.0
    %345 = vmatpush1.xpose.msra.mxu0 0.0
    %346 = vmatprep.mubr.f32.mxu0 0.0
    %347 = vmatmul.mubr.f32.gmra.mrb[0].mxu0 %v250
    %v348 = vpop.f32.mrb[0].mxu0
    %v349 = vadd.f32 %v225, %v348
    %v350 = vpop.f32.mrb[0].mxu0
    %351 = vmatprep.mubr.f32.mxu0 0.0
    %352 = vmatmul.mubr.f32.gmra.mrb[0].mxu0 %v252
    %v353 = vpop.f32.mrb[0].mxu0
    %v354 = vadd.f32 %v226, %v353
    %v355 = vpop.f32.mrb[0].mxu0
    %356 = vmatprep.mubr.f32.mxu0 0.0
    %357 = vmatmul.mubr.f32.gmra.mrb[0].mxu0 %v254
    %v358 = vpop.f32.mrb[0].mxu0
    %v359 = vadd.f32 %v227, %v358
    %v360 = vpop.f32.mrb[0].mxu0
    %361 = vmatprep.mubr.f32.mxu0 0.0
    %362 = vmatmul.mubr.f32.gmra.mrb[0].mxu0 %v256
    %v363 = vpop.f32.mrb[0].mxu0
    %v364 = vadd.f32 %v228, %v363
    %v365 = vpop.f32.mrb[0].mxu0
    %366 = vmatprep.mubr.f32.mxu0 0.0
    %367 = vmatmul.mubr.f32.gmra.mrb[0].mxu0 %v258
    %v368 = vpop.f32.mrb[0].mxu0
    %v369 = vadd.f32 %v229, %v368
    %v370 = vpop.f32.mrb[0].mxu0
    %371 = vmatprep.mubr.f32.mxu0 0.0
    %372 = vmatmul.mubr.f32.gmra.mrb[0].mxu0 %v260
    %v373 = vpop.f32.mrb[0].mxu0
    %v374 = vadd.f32 %v230, %v373
    %v375 = vpop.f32.mrb[0].mxu0
    %376 = vmatprep.mubr.f32.mxu0 0.0
    %377 = vmatmul.mubr.f32.gmra.mrb[0].mxu0 %v262
    %v378 = vpop.f32.mrb[0].mxu0
    %v379 = vadd.f32 %v231, %v378
    %v380 = vpop.f32.mrb[0].mxu0
    %381 = vmatprep.mubr.f32.mxu0 0.0
    %382 = vmatmul.mubr.f32.gmra.mrb[0].mxu0 %v264
    %v383 = vpop.f32.mrb[0].mxu0
    %v384 = vadd.f32 %v232, %v383
    %v385 = vpop.f32.mrb[0].mxu0
    %386 = vdwg.mxu0
    %vm387 = vcmask 523264
    %v388 = vsel %vm387, %v349, -inf
    %389 = vmax.xlane.f32.xlu0 %v388
    %v390 = vpop.xlane.xlu0 %389
    %v391 = vsel %vm387, %v354, -inf
    %392 = vmax.xlane.f32.xlu0 %v391
    %v393 = vpop.xlane.xlu0 %392
    %v394 = vsel %vm387, %v359, -inf
    %395 = vmax.xlane.f32.xlu0 %v394
    %v396 = vpop.xlane.xlu0 %395
    %v397 = vsel %vm387, %v364, -inf
    %398 = vmax.xlane.f32.xlu0 %v397
    %v399 = vpop.xlane.xlu0 %398
    %v400 = vsel %vm387, %v369, -inf
    %401 = vmax.xlane.f32.xlu0 %v400
    %v402 = vpop.xlane.xlu0 %401
    %v403 = vsel %vm387, %v374, -inf
    %404 = vmax.xlane.f32.xlu0 %v403
    %v405 = vpop.xlane.xlu0 %404
    %v406 = vsel %vm387, %v379, -inf
    %407 = vmax.xlane.f32.xlu0 %v406
    %v408 = vpop.xlane.xlu0 %407
    %v409 = vsel %vm387, %v384, -inf
    %410 = vmax.xlane.f32.xlu0 %v409
    %v411 = vpop.xlane.xlu0 %410
    %v412 = vsub.f32 %v349, %v390
    %v413 = vsub.f32 %v354, %v393
    %v414 = vsub.f32 %v359, %v396
    %v415 = vsub.f32 %v364, %v399
    %v416 = vsub.f32 %v369, %v402
    %v417 = vsub.f32 %v374, %v405
    %v418 = vsub.f32 %v379, %v408
    %v419 = vsub.f32 %v384, %v411
    %v420 = vmul.f32 %v412, 1.442695
    %v421 = vpow.pop %v420
    %v422 = vmul.f32 %v413, 1.442695
    %v423 = vpow.pop %v422
    %v424 = vmul.f32 %v414, 1.442695
    %v425 = vpow.pop %v424
    %v426 = vmul.f32 %v415, 1.442695
    %v427 = vpow.pop %v426
    %v428 = vmul.f32 %v416, 1.442695
    %v429 = vpow.pop %v428
    %v430 = vmul.f32 %v417, 1.442695
    %v431 = vpow.pop %v430
    %v432 = vmul.f32 %v418, 1.442695
    %v433 = vpow.pop %v432
    %v434 = vmul.f32 %v419, 1.442695
    %v435 = vpow.pop %v434
    %v436 = vsel %vm387, %v421, 0.0
    %437 = vadd.xlane.f32.xlu0 %v436
    %v438 = vpop.xlane.xlu0 %437
    %v439 = vsel %vm387, %v423, 0.0
    %440 = vadd.xlane.f32.xlu0 %v439
    %v441 = vpop.xlane.xlu0 %440
    %v442 = vsel %vm387, %v425, 0.0
    %443 = vadd.xlane.f32.xlu0 %v442
    %v444 = vpop.xlane.xlu0 %443
    %v445 = vsel %vm387, %v427, 0.0
    %446 = vadd.xlane.f32.xlu0 %v445
    %v447 = vpop.xlane.xlu0 %446
    %v448 = vsel %vm387, %v429, 0.0
    %449 = vadd.xlane.f32.xlu0 %v448
    %v450 = vpop.xlane.xlu0 %449
    %v451 = vsel %vm387, %v431, 0.0
    %452 = vadd.xlane.f32.xlu0 %v451
    %v453 = vpop.xlane.xlu0 %452
    %v454 = vsel %vm387, %v433, 0.0
    %455 = vadd.xlane.f32.xlu0 %v454
    %v456 = vpop.xlane.xlu0 %455
    %v457 = vsel %vm387, %v435, 0.0
    %458 = vadd.xlane.f32.xlu0 %v457
    %v459 = vpop.xlane.xlu0 %458
    %v460 = vrcp.pop %v438
    %v461 = vrcp.pop %v441
    %v462 = vrcp.pop %v444
    %v463 = vrcp.pop %v447
    %v464 = vrcp.pop %v450
    %v465 = vrcp.pop %v453
    %v466 = vrcp.pop %v456
    %v467 = vrcp.pop %v459
    %v468 = vmul.f32 %v421, %v460
    %v469 = vmul.f32 %v423, %v461
    %v470 = vmul.f32 %v425, %v462
    %v471 = vmul.f32 %v427, %v463
    %v472 = vmul.f32 %v429, %v464
    %v473 = vmul.f32 %v431, %v465
    %v474 = vmul.f32 %v433, %v466
    %v475 = vmul.f32 %v435, %v467
    %476 = vrot.lane.b32.xlu0 %v203, 64
    %v477 = vpop.permute.xlu0 %476
    %478 = vrot.lane.b32.xlu0 %v208, 64
    %v479 = vpop.permute.xlu0 %478
    %480 = vrot.lane.b32.xlu0 %v214, 64
    %v481 = vpop.permute.xlu0 %480
    %482 = vrot.lane.b32.xlu0 %v216, 64
    %v483 = vpop.permute.xlu0 %482
    %484 = vrot.lane.b32.xlu0 %v218, 64
    %v485 = vpop.permute.xlu0 %484
    %486 = vrot.lane.b32.xlu0 %v220, 64
    %v487 = vpop.permute.xlu0 %486
    %488 = vrot.lane.b32.xlu0 %v222, 64
    %v489 = vpop.permute.xlu0 %488
    %490 = vrot.lane.b32.xlu0 %v224, 64
    %v491 = vpop.permute.xlu0 %490
    %v501 = vsel %vm387, %v468, 0
    %v504 = vsel %vm387, %v469, 0
    %v507 = vsel %vm387, %v470, 0
    %v510 = vsel %vm387, %v471, 0
    %v513 = vsel %vm387, %v472, 0
    %v516 = vsel %vm387, %v473, 0
    %v519 = vsel %vm387, %v474, 0
    %v522 = vsel %vm387, %v475, 0
    %524 = vmatprep.subr.mxu0 0.0
    %525 = vmatpush1.msra.mxu0 %v477
    %526 = vmatprep.subr.mxu0 0.0
    %527 = vmatpush1.msra.mxu0 %v479
    %528 = vmatprep.subr.mxu0 0.0
    %529 = vmatpush1.msra.mxu0 %v481
    %530 = vmatprep.subr.mxu0 0.0
    %531 = vmatpush1.msra.mxu0 %v483
    %532 = vmatprep.subr.mxu0 0.0
    %533 = vmatpush1.msra.mxu0 %v485
    %534 = vmatprep.subr.mxu0 0.0
    %535 = vmatpush1.msra.mxu0 %v487
    %536 = vmatprep.subr.mxu0 0.0
    %537 = vmatpush1.msra.mxu0 %v489
    %538 = vmatprep.subr.mxu0 0.0
    %539 = vmatpush1.msra.mxu0 %v491
    %540 = vmatprep.subr.mxu0 0.0
    %541 = vmatpush1.msra.mxu0 0.0
    %542 = vmatprep.subr.mxu0 0.0
    %543 = vmatpush1.msra.mxu0 0.0
    %544 = vmatprep.subr.mxu0 0.0
    %545 = vmatpush1.msra.mxu0 0.0
    %546 = vmatprep.subr.mxu0 0.0
    %547 = vmatpush1.msra.mxu0 0.0
    %548 = vmatprep.subr.mxu0 0.0
    %549 = vmatpush1.msra.mxu0 0.0
    %550 = vmatprep.subr.mxu0 0.0
    %551 = vmatpush1.msra.mxu0 0.0
    %552 = vmatprep.subr.mxu0 0.0
    %553 = vmatpush1.msra.mxu0 0.0
    %554 = vmatprep.subr.mxu0 0.0
    %555 = vmatpush1.msra.mxu0 0.0
    %556 = vmatprep.subr.mxu0 0.0
    %557 = vmatpush1.msra.mxu0 0.0
    %558 = vmatprep.subr.mxu0 0.0
    %559 = vmatpush1.msra.mxu0 0.0
    %560 = vmatprep.subr.mxu0 0.0
    %561 = vmatpush1.msra.mxu0 0.0
    %562 = vmatprep.subr.mxu0 0.0
    %563 = vmatpush1.msra.mxu0 0.0
    %564 = vmatprep.subr.mxu0 0.0
    %565 = vmatpush1.msra.mxu0 0.0
    %566 = vmatprep.subr.mxu0 0.0
    %567 = vmatpush1.msra.mxu0 0.0
    %568 = vmatprep.subr.mxu0 0.0
    %569 = vmatpush1.msra.mxu0 0.0
    %570 = vmatprep.subr.mxu0 0.0
    %571 = vmatpush1.msra.mxu0 0.0
    %572 = vmatprep.subr.mxu0 0.0
    %573 = vmatpush1.msra.mxu0 0.0
    %574 = vmatprep.subr.mxu0 0.0
    %575 = vmatpush1.msra.mxu0 0.0
    %576 = vmatprep.subr.mxu0 0.0
    %577 = vmatpush1.msra.mxu0 0.0
    %578 = vmatprep.subr.mxu0 0.0
    %579 = vmatpush1.msra.mxu0 0.0
    %580 = vmatprep.subr.mxu0 0.0
    %581 = vmatpush1.msra.mxu0 0.0
    %582 = vmatprep.subr.mxu0 0.0
    %583 = vmatpush1.msra.mxu0 0.0
    %584 = vmatprep.subr.mxu0 0.0
    %585 = vmatpush1.msra.mxu0 0.0
    %586 = vmatprep.subr.mxu0 0.0
    %587 = vmatpush1.msra.mxu0 0.0
    %588 = vmatprep.mubr.f32.mxu0 0.0
    %589 = vmatmul.mubr.f32.gmra.mrb[0].mxu0 %v501
    %v590 = vpop.f32.mrb[0].mxu0
    %v591 = vadd.f32 0.0, %v590
    %v592 = vpop.f32.mrb[0].mxu0
    %593 = vmatprep.mubr.f32.mxu0 0.0
    %594 = vmatmul.mubr.f32.gmra.mrb[0].mxu0 %v504
    %v595 = vpop.f32.mrb[0].mxu0
    %v596 = vadd.f32 0.0, %v595
    %v597 = vpop.f32.mrb[0].mxu0
    %598 = vmatprep.mubr.f32.mxu0 0.0
    %599 = vmatmul.mubr.f32.gmra.mrb[0].mxu0 %v507
    %v600 = vpop.f32.mrb[0].mxu0
    %v601 = vadd.f32 0.0, %v600
    %v602 = vpop.f32.mrb[0].mxu0
    %603 = vmatprep.mubr.f32.mxu0 0.0
    %604 = vmatmul.mubr.f32.gmra.mrb[0].mxu0 %v510
    %v605 = vpop.f32.mrb[0].mxu0
    %v606 = vadd.f32 0.0, %v605
    %v607 = vpop.f32.mrb[0].mxu0
    %608 = vmatprep.mubr.f32.mxu0 0.0
    %609 = vmatmul.mubr.f32.gmra.mrb[0].mxu0 %v513
    %v610 = vpop.f32.mrb[0].mxu0
    %v611 = vadd.f32 0.0, %v610
    %v612 = vpop.f32.mrb[0].mxu0
    %613 = vmatprep.mubr.f32.mxu0 0.0
    %614 = vmatmul.mubr.f32.gmra.mrb[0].mxu0 %v516
    %v615 = vpop.f32.mrb[0].mxu0
    %v616 = vadd.f32 0.0, %v615
    %v617 = vpop.f32.mrb[0].mxu0
    %618 = vmatprep.mubr.f32.mxu0 0.0
    %619 = vmatmul.mubr.f32.gmra.mrb[0].mxu0 %v519
    %v620 = vpop.f32.mrb[0].mxu0
    %v621 = vadd.f32 0.0, %v620
    %v622 = vpop.f32.mrb[0].mxu0
    %623 = vmatprep.mubr.f32.mxu0 0.0
    %624 = vmatmul.mubr.f32.gmra.mrb[0].mxu0 %v522
    %v625 = vpop.f32.mrb[0].mxu0
    %v626 = vadd.f32 0.0, %v625
    %v627 = vpop.f32.mrb[0].mxu0
    %628 = vdwg.mxu0
    %631 = vrot.lane.b32.xlu0 %v601, 8
    %v632 = vpop.permute.xlu0 %631
    %633 = vrot.lane.b32.xlu0 %v606, 8
    %v634 = vpop.permute.xlu0 %633
    %639 = vrot.lane.b32.xlu0 %v611, 16
    %v640 = vpop.permute.xlu0 %639
    %641 = vrot.lane.b32.xlu0 %v616, 16
    %v642 = vpop.permute.xlu0 %641
    %647 = vrot.lane.b32.xlu0 %v621, 24
    %v648 = vpop.permute.xlu0 %647
    %649 = vrot.lane.b32.xlu0 %v626, 24
    %v650 = vpop.permute.xlu0 %649
    %v653 = vsel %vm249, %v591, %v632
    %v654 = vsel %vm249, %v596, %v634
    %vm655 = vcmask 130048
    %v656 = vsel %vm655, %v653, %v640
    %v657 = vsel %vm655, %v654, %v642
    %vm658 = vcmask 195584
    %v659 = vsel %vm658, %v656, %v648
    %v660 = vsel %vm658, %v657, %v650
    %665 = vrot.lane.b32.xlu0 %v74, 32
    %v666 = vpop.permute.xlu0 %665
    %667 = vrot.lane.b32.xlu0 %v76, 32
    %v668 = vpop.permute.xlu0 %667
    %669 = vrot.lane.b32.xlu0 %v78, 32
    %v670 = vpop.permute.xlu0 %669
    %671 = vrot.lane.b32.xlu0 %v80, 32
    %v672 = vpop.permute.xlu0 %671
    %v678 = vsel %vm86, %v659, 0
    %v681 = vsel %vm86, %v660, 0
    %683 = vmatprep.subr.mxu0 0.0
    %684 = vmatpush1.msra.mxu0 %v666
    %685 = vmatprep.subr.mxu0 0.0
    %686 = vmatpush1.msra.mxu0 %v668
    %687 = vmatprep.subr.mxu0 0.0
    %688 = vmatpush1.msra.mxu0 %v670
    %689 = vmatprep.subr.mxu0 0.0
    %690 = vmatpush1.msra.mxu0 %v672
    %691 = vmatprep.subr.mxu0 0.0
    %692 = vmatpush1.msra.mxu0 0.0
    %693 = vmatprep.subr.mxu0 0.0
    %694 = vmatpush1.msra.mxu0 0.0
    %695 = vmatprep.subr.mxu0 0.0
    %696 = vmatpush1.msra.mxu0 0.0
    %697 = vmatprep.subr.mxu0 0.0
    %698 = vmatpush1.msra.mxu0 0.0
    %699 = vmatprep.subr.mxu0 0.0
    %700 = vmatpush1.msra.mxu0 0.0
    %701 = vmatprep.subr.mxu0 0.0
    %702 = vmatpush1.msra.mxu0 0.0
    %703 = vmatprep.subr.mxu0 0.0
    %704 = vmatpush1.msra.mxu0 0.0
    %705 = vmatprep.subr.mxu0 0.0
    %706 = vmatpush1.msra.mxu0 0.0
    %707 = vmatprep.subr.mxu0 0.0
    %708 = vmatpush1.msra.mxu0 0.0
    %709 = vmatprep.subr.mxu0 0.0
    %710 = vmatpush1.msra.mxu0 0.0
    %711 = vmatprep.subr.mxu0 0.0
    %712 = vmatpush1.msra.mxu0 0.0
    %713 = vmatprep.subr.mxu0 0.0
    %714 = vmatpush1.msra.mxu0 0.0
    %715 = vmatprep.subr.mxu0 0.0
    %716 = vmatpush1.msra.mxu0 0.0
    %717 = vmatprep.subr.mxu0 0.0
    %718 = vmatpush1.msra.mxu0 0.0
    %719 = vmatprep.subr.mxu0 0.0
    %720 = vmatpush1.msra.mxu0 0.0
    %721 = vmatprep.subr.mxu0 0.0
    %722 = vmatpush1.msra.mxu0 0.0
    %723 = vmatprep.subr.mxu0 0.0
    %724 = vmatpush1.msra.mxu0 0.0
    %725 = vmatprep.subr.mxu0 0.0
    %726 = vmatpush1.msra.mxu0 0.0
    %727 = vmatprep.subr.mxu0 0.0
    %728 = vmatpush1.msra.mxu0 0.0
    %729 = vmatprep.subr.mxu0 0.0
    %730 = vmatpush1.msra.mxu0 0.0
    %731 = vmatprep.subr.mxu0 0.0
    %732 = vmatpush1.msra.mxu0 0.0
    %733 = vmatprep.subr.mxu0 0.0
    %734 = vmatpush1.msra.mxu0 0.0
    %735 = vmatprep.subr.mxu0 0.0
    %736 = vmatpush1.msra.mxu0 0.0
    %737 = vmatprep.subr.mxu0 0.0
    %738 = vmatpush1.msra.mxu0 0.0
    %739 = vmatprep.subr.mxu0 0.0
    %740 = vmatpush1.msra.mxu0 0.0
    %741 = vmatprep.subr.mxu0 0.0
    %742 = vmatpush1.msra.mxu0 0.0
    %743 = vmatprep.subr.mxu0 0.0
    %744 = vmatpush1.msra.mxu0 0.0
    %745 = vmatprep.subr.mxu0 0.0
    %746 = vmatpush1.msra.mxu0 0.0
    %747 = vmatprep.mubr.f32.mxu0 0.0
    %748 = vmatmul.mubr.f32.gmra.mrb[0].mxu0 %v678
    %v749 = vpop.f32.mrb[0].mxu0
    %v750 = vadd.f32 0.0, %v749
    %v751 = vpop.f32.mrb[0].mxu0
    %752 = vmatprep.mubr.f32.mxu0 0.0
    %753 = vmatmul.mubr.f32.gmra.mrb[0].mxu0 %v681
    %v754 = vpop.f32.mrb[0].mxu0
    %v755 = vadd.f32 0.0, %v754
    %v756 = vpop.f32.mrb[0].mxu0
    %757 = vdwg.mxu0
    %v758 = vadd.f32 %v71, %v750
    %v759 = vadd.f32 %v72, %v755
    %v760 = vlaneseq
    %v761 = vshrl.u32 %v760, 7
    %v762 = vsub.s32 3, %v761
    %v763 = vrot.slane %v73, %v762
    %v764 = vadd.f32 %v758, %v763
    %v765 = vadd.f32 %v759, %v763
    %v766 = vsel %vm86, %v764, 0.0
    %767 = vadd.xlane.f32.xlu0 %v766
    %v768 = vpop.xlane.xlu0 %767
    %v769 = vsel %vm86, %v765, 0.0
    %770 = vadd.xlane.f32.xlu0 %v769
    %v771 = vpop.xlane.xlu0 %770
    %v772 = vmul.f32 %v768, %v93
    %v773 = vmul.f32 %v771, %v93
    %v774 = vsub.f32 %v764, %v772
    %v775 = vsub.f32 %v765, %v773
    %v776 = vmul.f32 %v774, %v774
    %v777 = vmul.f32 %v775, %v775
    %v778 = vsel %vm86, %v776, 0.0
    %779 = vadd.xlane.f32.xlu0 %v778
    %v780 = vpop.xlane.xlu0 %779
    %v781 = vsel %vm86, %v777, 0.0
    %782 = vadd.xlane.f32.xlu0 %v781
    %v783 = vpop.xlane.xlu0 %782
    %v784 = vmul.f32 %v780, %v93
    %v785 = vmul.f32 %v783, %v93
    %v786 = vadd.f32 %v784, 1e-06
    %v787 = vadd.f32 %v785, 1e-06
    %v788 = vrsqrt.pop %v786
    %v789 = vrsqrt.pop %v787
    %v790 = vmul.f32 %v774, %v788
    %v791 = vmul.f32 %v775, %v789
    %v792 = vlaneseq
    %v793 = vshrl.u32 %v792, 7
    %v794 = vsub.s32 4, %v793
    %v795 = vrot.slane %v73, %v794
    %v796 = vmul.f32 %v790, %v795
    %v797 = vmul.f32 %v791, %v795
    %v798 = vlaneseq
    %v799 = vshrl.u32 %v798, 7
    %v800 = vsub.s32 5, %v799
    %v801 = vrot.slane %v73, %v800
    %v802 = vadd.f32 %v796, %v801
    %v803 = vadd.f32 %v797, %v801
    %v804 = vlaneseq
    %v805 = vshrl.u32 %v804, 7
    %v806 = vsub.s32 6, %v805
    %v807 = vrot.slane %v73, %v806
    %v809 = vsel %vm86, %v802, 0
    %v812 = vsel %vm86, %v803, 0
    %814 = vmatprep.subr.mxu0 0.0
    %815 = vmatpush1.msra.mxu0 %v75
    %816 = vmatprep.subr.mxu0 0.0
    %817 = vmatpush1.msra.mxu0 %v77
    %818 = vmatprep.subr.mxu0 0.0
    %819 = vmatpush1.msra.mxu0 %v79
    %820 = vmatprep.subr.mxu0 0.0
    %821 = vmatpush1.msra.mxu0 %v81
    %822 = vmatprep.subr.mxu0 0.0
    %823 = vmatpush1.msra.mxu0 0.0
    %824 = vmatprep.subr.mxu0 0.0
    %825 = vmatpush1.msra.mxu0 0.0
    %826 = vmatprep.subr.mxu0 0.0
    %827 = vmatpush1.msra.mxu0 0.0
    %828 = vmatprep.subr.mxu0 0.0
    %829 = vmatpush1.msra.mxu0 0.0
    %830 = vmatprep.subr.mxu0 0.0
    %831 = vmatpush1.msra.mxu0 0.0
    %832 = vmatprep.subr.mxu0 0.0
    %833 = vmatpush1.msra.mxu0 0.0
    %834 = vmatprep.subr.mxu0 0.0
    %835 = vmatpush1.msra.mxu0 0.0
    %836 = vmatprep.subr.mxu0 0.0
    %837 = vmatpush1.msra.mxu0 0.0
    %838 = vmatprep.subr.mxu0 0.0
    %839 = vmatpush1.msra.mxu0 0.0
    %840 = vmatprep.subr.mxu0 0.0
    %841 = vmatpush1.msra.mxu0 0.0
    %842 = vmatprep.subr.mxu0 0.0
    %843 = vmatpush1.msra.mxu0 0.0
    %844 = vmatprep.subr.mxu0 0.0
    %845 = vmatpush1.msra.mxu0 0.0
    %846 = vmatprep.subr.mxu0 0.0
    %847 = vmatpush1.msra.mxu0 0.0
    %848 = vmatprep.subr.mxu0 0.0
    %849 = vmatpush1.msra.mxu0 0.0
    %850 = vmatprep.subr.mxu0 0.0
    %851 = vmatpush1.msra.mxu0 0.0
    %852 = vmatprep.subr.mxu0 0.0
    %853 = vmatpush1.msra.mxu0 0.0
    %854 = vmatprep.subr.mxu0 0.0
    %855 = vmatpush1.msra.mxu0 0.0
    %856 = vmatprep.subr.mxu0 0.0
    %857 = vmatpush1.msra.mxu0 0.0
    %858 = vmatprep.subr.mxu0 0.0
    %859 = vmatpush1.msra.mxu0 0.0
    %860 = vmatprep.subr.mxu0 0.0
    %861 = vmatpush1.msra.mxu0 0.0
    %862 = vmatprep.subr.mxu0 0.0
    %863 = vmatpush1.msra.mxu0 0.0
    %864 = vmatprep.subr.mxu0 0.0
    %865 = vmatpush1.msra.mxu0 0.0
    %866 = vmatprep.subr.mxu0 0.0
    %867 = vmatpush1.msra.mxu0 0.0
    %868 = vmatprep.subr.mxu0 0.0
    %869 = vmatpush1.msra.mxu0 0.0
    %870 = vmatprep.subr.mxu0 0.0
    %871 = vmatpush1.msra.mxu0 0.0
    %872 = vmatprep.subr.mxu0 0.0
    %873 = vmatpush1.msra.mxu0 0.0
    %874 = vmatprep.subr.mxu0 0.0
    %875 = vmatpush1.msra.mxu0 0.0
    %876 = vmatprep.subr.mxu0 0.0
    %877 = vmatpush1.msra.mxu0 0.0
    %878 = vmatprep.mubr.f32.mxu0 0.0
    %879 = vmatmul.mubr.f32.gmra.mrb[0].mxu0 %v809
    %v880 = vpop.f32.mrb[0].mxu0
    %v881 = vadd.f32 %v807, %v880
    %v882 = vpop.f32.mrb[0].mxu0
    %883 = vmatprep.mubr.f32.mxu0 0.0
    %884 = vmatmul.mubr.f32.gmra.mrb[0].mxu0 %v812
    %v885 = vpop.f32.mrb[0].mxu0
    %v886 = vadd.f32 %v807, %v885
    %v887 = vpop.f32.mrb[0].mxu0
    %888 = vdwg.mxu0
    %v889 = vmax.f32 %v881, 0.0
    %v890 = vmax.f32 %v886, 0.0
    %v891 = vlaneseq
    %v892 = vshrl.u32 %v891, 7
    %v893 = vsub.s32 7, %v892
    %v894 = vrot.slane %v73, %v893
    %903 = vrot.lane.b32.xlu0 %v75, 64
    %v904 = vpop.permute.xlu0 %903
    %905 = vrot.lane.b32.xlu0 %v77, 64
    %v906 = vpop.permute.xlu0 %905
    %907 = vrot.lane.b32.xlu0 %v79, 64
    %v908 = vpop.permute.xlu0 %907
    %909 = vrot.lane.b32.xlu0 %v81, 64
    %v910 = vpop.permute.xlu0 %909
    %911 = vrot.lane.b32.xlu0 %v82, 64
    %v912 = vpop.permute.xlu0 %911
    %913 = vrot.lane.b32.xlu0 %v83, 64
    %v914 = vpop.permute.xlu0 %913
    %915 = vrot.lane.b32.xlu0 %v84, 64
    %v916 = vpop.permute.xlu0 %915
    %917 = vrot.lane.b32.xlu0 %v85, 64
    %v918 = vpop.permute.xlu0 %917
    %v928 = vsel %vm387, %v889, 0
    %v931 = vsel %vm387, %v890, 0
    %933 = vmatprep.subr.mxu0 0.0
    %934 = vmatpush1.msra.mxu0 %v904
    %935 = vmatprep.subr.mxu0 0.0
    %936 = vmatpush1.msra.mxu0 %v906
    %937 = vmatprep.subr.mxu0 0.0
    %938 = vmatpush1.msra.mxu0 %v908
    %939 = vmatprep.subr.mxu0 0.0
    %940 = vmatpush1.msra.mxu0 %v910
    %941 = vmatprep.subr.mxu0 0.0
    %942 = vmatpush1.msra.mxu0 %v912
    %943 = vmatprep.subr.mxu0 0.0
    %944 = vmatpush1.msra.mxu0 %v914
    %945 = vmatprep.subr.mxu0 0.0
    %946 = vmatpush1.msra.mxu0 %v916
    %947 = vmatprep.subr.mxu0 0.0
    %948 = vmatpush1.msra.mxu0 %v918
    %949 = vmatprep.subr.mxu0 0.0
    %950 = vmatpush1.msra.mxu0 0.0
    %951 = vmatprep.subr.mxu0 0.0
    %952 = vmatpush1.msra.mxu0 0.0
    %953 = vmatprep.subr.mxu0 0.0
    %954 = vmatpush1.msra.mxu0 0.0
    %955 = vmatprep.subr.mxu0 0.0
    %956 = vmatpush1.msra.mxu0 0.0
    %957 = vmatprep.subr.mxu0 0.0
    %958 = vmatpush1.msra.mxu0 0.0
    %959 = vmatprep.subr.mxu0 0.0
    %960 = vmatpush1.msra.mxu0 0.0
    %961 = vmatprep.subr.mxu0 0.0
    %962 = vmatpush1.msra.mxu0 0.0
    %963 = vmatprep.subr.mxu0 0.0
    %964 = vmatpush1.msra.mxu0 0.0
    %965 = vmatprep.subr.mxu0 0.0
    %966 = vmatpush1.msra.mxu0 0.0
    %967 = vmatprep.subr.mxu0 0.0
    %968 = vmatpush1.msra.mxu0 0.0
    %969 = vmatprep.subr.mxu0 0.0
    %970 = vmatpush1.msra.mxu0 0.0
    %971 = vmatprep.subr.mxu0 0.0
    %972 = vmatpush1.msra.mxu0 0.0
    %973 = vmatprep.subr.mxu0 0.0
    %974 = vmatpush1.msra.mxu0 0.0
    %975 = vmatprep.subr.mxu0 0.0
    %976 = vmatpush1.msra.mxu0 0.0
    %977 = vmatprep.subr.mxu0 0.0
    %978 = vmatpush1.msra.mxu0 0.0
    %979 = vmatprep.subr.mxu0 0.0
    %980 = vmatpush1.msra.mxu0 0.0
    %981 = vmatprep.subr.mxu0 0.0
    %982 = vmatpush1.msra.mxu0 0.0
    %983 = vmatprep.subr.mxu0 0.0
    %984 = vmatpush1.msra.mxu0 0.0
    %985 = vmatprep.subr.mxu0 0.0
    %986 = vmatpush1.msra.mxu0 0.0
    %987 = vmatprep.subr.mxu0 0.0
    %988 = vmatpush1.msra.mxu0 0.0
    %989 = vmatprep.subr.mxu0 0.0
    %990 = vmatpush1.msra.mxu0 0.0
    %991 = vmatprep.subr.mxu0 0.0
    %992 = vmatpush1.msra.mxu0 0.0
    %993 = vmatprep.subr.mxu0 0.0
    %994 = vmatpush1.msra.mxu0 0.0
    %995 = vmatprep.subr.mxu0 0.0
    %996 = vmatpush1.msra.mxu0 0.0
    %997 = vmatprep.mubr.f32.mxu0 0.0
    %998 = vmatmul.mubr.f32.gmra.mrb[0].mxu0 %v928
    %v999 = vpop.f32.mrb[0].mxu0
    %v1000 = vadd.f32 %v894, %v999
    %v1001 = vpop.f32.mrb[0].mxu0
    %1002 = vmatprep.mubr.f32.mxu0 0.0
    %1003 = vmatmul.mubr.f32.gmra.mrb[0].mxu0 %v931
    %v1004 = vpop.f32.mrb[0].mxu0
    %v1005 = vadd.f32 %v894, %v1004
    %v1006 = vpop.f32.mrb[0].mxu0
    %1007 = vdwg.mxu0
    %v1008 = vadd.f32 %v764, %v1000
    %v1009 = vadd.f32 %v765, %v1005
    %1010 = vst.msk [vmem:[#allocation10] sm:$0xff] %vm86, %v1008
    %1011 = vst.msk [vmem:[#allocation10 + $0x8] sm:$0xff] %vm86, %v1009
    // Predicated region
    $region34: #{tpu_custom_call.1} parent=1 // pred_check
      _
    $region35: #{tpu_custom_call.1} parent=1 // pred_check_branch
      %1013 = sbr.rel (0) target = $region37
    $region36: #{tpu_custom_call.1} parent=1 // pred_region
      %s1015 = ssub.s32 256, 256
      %1016 = vsyncadd [#allocation4], %s1015
      %s1017 = sshll.u32 [#allocation10], 4
      %s1018 = int_to_ptr.vmem [resolvable:$true] %s1017
      %1023 = dma.vmem_to_hbm [thread:$0]  %s1018, 256, %s4, [#allocation4], 128, 128, 8
    $region37: #{tpu_custom_call.1} parent=1 // pred_fallthru
      _
    // Predicated region
    $region38: #{tpu_custom_call.1} parent=1 // pred_check
      _
    $region39: #{tpu_custom_call.1} parent=1 // pred_check_branch
      %1025 = sbr.rel (0) target = $region41
    $region40: #{tpu_custom_call.1} parent=1 // pred_region
      %1026 = dma.done [#allocation4], 256
    $region41: #{tpu_custom_call.1} parent=1 // pred_fallthru
      _
    %1027 = vsyncpa [#allocation3], 1
    %1028 = vsyncpa [#allocation6], 1
    %1029 = vsyncpa [#allocation9], 1
    %1030 = vsyncpa [#allocation4], 1

</llo_original>
